<compile_context>
chip_gen: v5e
topology: v5e:2x2
jax: 0.10.0
libtpu: 0.0.40
codegen_flags: <defaults>
</compile_context>

<pallas_src>
import jax
import jax.numpy as jnp
from jax.experimental import pallas as pl
from jax.experimental.pallas import tpu as pltpu


def _postnet_kernel(x_ref, w_ref, b_ref, o_ref):
    # x_ref: (TM, KP)   activation tile (pack rows folded into lanes)
    # w_ref: (KP, NOUT) block-diagonal weight (VMEM-resident)
    # b_ref: (1, NOUT)  tiled bias (VMEM-resident)
    # o_ref: (TM, NOUT)
    acc = jnp.dot(x_ref[...], w_ref[...], preferred_element_type=jnp.float32)
    o_ref[...] = (acc + b_ref[...].astype(jnp.float32)).astype(o_ref.dtype)


def _choose_pack(M, K):
    """Pick how many consecutive rows to fold into the lane (contraction) dim."""
    if K >= 128:          # contraction already deep enough for the MXU
        return 1
    for p in (4, 2):
        if M % p == 0:
            return p
    return 1


def prepare_postnet_params(weight, bias, pack):
    """Fold PyTorch Conv1d weight (C_out, C_in, 1) into matmul form.

    pack == 1: (C_in, C_out) weight and (1, C_out) bias.
    pack  > 1: block-diagonal (pack*C_in, pack*C_out) weight and tiled bias,
               so packed rows multiply only their own weight block.
    """
    w2d = jnp.transpose(weight[:, :, 0], (1, 0))          # (C_in, C_out)
    if pack == 1:
        return w2d, bias.reshape(1, -1)
    eye = jnp.eye(pack, dtype=w2d.dtype)
    w_bd = jnp.kron(eye, w2d)                              # (pack*C_in, pack*C_out)
    b_bd = jnp.tile(bias, pack).reshape(1, -1)             # (1, pack*C_out)
    return w_bd, b_bd


def postnet_forward(inputs, weight, bias, *, tm=4096, force_pallas=False):
    """Postnet forward.

    inputs: (B, T, C_in); weight: (C_out, C_in, 1); bias: (C_out,)
    returns: (B, T, C_out)

    tm = block rows (in packed-row space).  Default (4096) keeps the
    double-buffered VMEM footprint ~17 MiB (safe on v7x's 64 MiB/TC); sweep
    upward on v5e/v6e (128 MiB VMEM) if HBM-bound.
    """
    B, T, C_in = inputs.shape
    C_out = weight.shape[0]
    M = B * T

    # Small-M fast path: one-block grids get zero pipelining and still pay
    # pallas_call launch overhead; plain XLA wins for decode/eval shapes.
    if not force_pallas and M < 2048:
        out = jnp.einsum("bti,oi->bto", inputs, weight[:, :, 0],
                         preferred_element_type=jnp.float32)
        return (out + bias.astype(jnp.float32)).astype(inputs.dtype)

    pack = _choose_pack(M, C_in)
    Mp = M // pack               # packed rows
    KP = pack * C_in             # contraction depth after packing
    NOUT = pack * C_out          # output width after packing

    w_bd, b_bd = prepare_postnet_params(weight, bias, pack)

    # Contiguous reinterpretation: 4 consecutive rows -> one lane-wide row.
    x2d = inputs.reshape(Mp, KP)

    # Tile the packed-row axis.  Single full-extent block is legal at any size;
    # multi-block tiles need an 8-aligned second-to-last block dim (ragged last
    # block is masked by Pallas, so no explicit padding of M is needed).
    if Mp <= tm:
        TM = Mp
    else:
        TM = max(8, (tm // 8) * 8)
    grid_m = pl.cdiv(Mp, TM)

    itemsize = jnp.dtype(inputs.dtype).itemsize
    cost = pl.CostEstimate(
        flops=2 * Mp * KP * NOUT,
        transcendentals=0,
        bytes_accessed=itemsize * (Mp * KP + KP * NOUT + NOUT + Mp * NOUT),
    )

    out2d = pl.pallas_call(
        _postnet_kernel,
        out_shape=jax.ShapeDtypeStruct((Mp, NOUT), inputs.dtype),
        grid_spec=pltpu.PrefetchScalarGridSpec(
            num_scalar_prefetch=0,
            grid=(grid_m,),
            in_specs=[
                pl.BlockSpec((TM, KP), lambda i: (i, 0)),    # activations: tiled over M
                pl.BlockSpec((KP, NOUT), lambda i: (0, 0)),  # weight: VMEM-resident
                pl.BlockSpec((1, NOUT), lambda i: (0, 0)),   # bias: VMEM-resident
            ],
            out_specs=pl.BlockSpec((TM, NOUT), lambda i: (i, 0)),
        ),
        compiler_params=pltpu.CompilerParams(
            dimension_semantics=("parallel",),   # rows are fully independent
            vmem_limit_bytes=48 << 20,           # headroom vs v7x 64 MiB/TC
        ),
        cost_estimate=cost,
    )(x2d, w_bd, b_bd)

    # (Mp, pack*C_out) -> (B, T, C_out) is a free row-major reinterpretation.
    return out2d.reshape(B, T, C_out)


if __name__ == "__main__":
    # Small shapes consistent with the module: batch=2, seq=8, input_size=32,
    # output_size=80 (Postnet default).
    B, T, C_in, C_out = 2, 8, 32, 80

    key = jax.random.PRNGKey(0)
    k_x, k_w, k_b = jax.random.split(key, 3)

    inputs = jax.random.normal(k_x, (B, T, C_in), dtype=jnp.float32)
    weight = jax.random.normal(k_w, (C_out, C_in, 1), dtype=jnp.float32) * 0.1
    bias = jax.random.normal(k_b, (C_out,), dtype=jnp.float32) * 0.1

    # Pure-JAX reference of the same semantics.
    ref = jnp.einsum("bti,oi->bto", inputs, weight[:, :, 0]) + bias

    # 1) Packed Pallas path (pack=4, K 32->128), forced since M is small.
    out = jax.block_until_ready(postnet_forward(inputs, weight, bias, force_pallas=True))
    assert out.shape == (B, T, C_out)
    assert jnp.allclose(out, ref, atol=1e-5, rtol=1e-5)

    # 2) Auto-dispatch (small-M einsum fast path) must match too.
    out_auto = jax.block_until_ready(postnet_forward(inputs, weight, bias))
    assert jnp.allclose(out_auto, ref, atol=1e-5, rtol=1e-5)

    # 3) Odd M: disables row packing and exercises the multi-block ragged grid.
    B2, T2 = 3, 7  # M = 21 -> pack=1; tm=8 -> grid=3 with a masked ragged last block
    x2 = jax.random.normal(k_x, (B2, T2, C_in), dtype=jnp.float32)
    ref2 = jnp.einsum("bti,oi->bto", x2, weight[:, :, 0]) + bias
    out2 = jax.block_until_ready(
        postnet_forward(x2, weight, bias, tm=8, force_pallas=True))
    assert out2.shape == (B2, T2, C_out)
    assert jnp.allclose(out2, ref2, atol=1e-5, rtol=1e-5)

    print("KERNEL_OK")
</pallas_src>

<mosaic_0001>
module attributes {stable_mosaic.version = 11 : i64} {
  func.func @_postnet_kernel(%arg0: i32, %arg1: memref<4x128xf32, #tpu.memory_space<vmem>>, %arg2: memref<128x320xf32, #tpu.memory_space<vmem>>, %arg3: memref<1x320xf32, #tpu.memory_space<vmem>>, %arg4: memref<4x320xf32, #tpu.memory_space<vmem>>) attributes {dimension_semantics = [#tpu.dimension_semantics<parallel>], iteration_bounds = array<i64: 1>, scalar_prefetch = 0 : i64, scratch_operands = 0 : i64, tpu.core_type = #tpu.core_type<tc>, window_params = [{transform_indices = @transform_0, window_bounds = array<i64: 4, 128>}, {pipeline_mode = #tpu.pipeline_mode<synchronous>, transform_indices = @transform_1, window_bounds = array<i64: 128, 320>}, {pipeline_mode = #tpu.pipeline_mode<synchronous>, transform_indices = @transform_2, window_bounds = array<i64: 1, 320>}, {transform_indices = @transform_3, window_bounds = array<i64: 4, 320>}]} {
    %c0 = arith.constant 0 : index
    %c0_0 = arith.constant 0 : index
    %0 = vector.load %arg1[%c0, %c0_0] : memref<4x128xf32, #tpu.memory_space<vmem>>, vector<4x128xf32>
    %c0_1 = arith.constant 0 : index
    %c0_2 = arith.constant 0 : index
    %1 = vector.load %arg2[%c0_1, %c0_2] : memref<128x320xf32, #tpu.memory_space<vmem>>, vector<128x320xf32>
    %cst = arith.constant dense<0.000000e+00> : vector<4x320xf32>
    %2 = tpu.matmul %0, %1, %cst {dimension_numbers = #tpu.dot_dimension_numbers<[1], [0], [0], [1], [0, 0, 1, 1], [], []>} : vector<4x128xf32>, vector<128x320xf32>, vector<4x320xf32> -> vector<4x320xf32>
    %c0_3 = arith.constant 0 : index
    %c0_4 = arith.constant 0 : index
    %3 = vector.load %arg3[%c0_3, %c0_4] : memref<1x320xf32, #tpu.memory_space<vmem>>, vector<1x320xf32>
    %4 = vector.broadcast %3 : vector<1x320xf32> to vector<4x320xf32>
    %5 = arith.addf %2, %4 : vector<4x320xf32>
    %c0_5 = arith.constant 0 : index
    %c0_6 = arith.constant 0 : index
    %6 = vector.load %arg4[%c0_5, %c0_6] : memref<4x320xf32, #tpu.memory_space<vmem>>, vector<4x320xf32>
    tpu.vector_store %arg4[%c0_5, %c0_6], %5 {strides = array<i32>} : memref<4x320xf32, #tpu.memory_space<vmem>>, vector<4x320xf32>,
    return
  }
  func.func @transform_0(%arg0: i32) -> (i32, i32) {
    %c0_i32 = arith.constant 0 : i32
    %c0_i32_0 = arith.constant 0 : i32
    return %arg0, %c0_i32 : i32, i32
  }
  func.func @transform_1(%arg0: i32) -> (i32, i32) {
    %c0_i32 = arith.constant 0 : i32
    %c0_i32_0 = arith.constant 0 : i32
    %c0_i32_1 = arith.constant 0 : i32
    return %c0_i32, %c0_i32_0 : i32, i32
  }
  func.func @transform_2(%arg0: i32) -> (i32, i32) {
    %c0_i32 = arith.constant 0 : i32
    %c0_i32_0 = arith.constant 0 : i32
    %c0_i32_1 = arith.constant 0 : i32
    return %c0_i32, %c0_i32_0 : i32, i32
  }
  func.func @transform_3(%arg0: i32) -> (i32, i32) {
    %c0_i32 = arith.constant 0 : i32
    %c0_i32_0 = arith.constant 0 : i32
    return %arg0, %c0_i32 : i32, i32
  }
}

</mosaic_0001>

<llo_original>
// kernel: tpu_custom_call.1
$region0: #{tpu_custom_call.1}
  #allocation0 [shape = 'u32[]', space=smem, size = 0x4, offset = 0x4, fixed_abs, tag = 'smem constant byte address 0x4 - core index']
  #allocation1 [shape = 'u32[72,128]{1,0:T(1,128)}', space=vmem, size = 0x9000, scoped, tag = 'internal scratch']
  %s0 = inlined_call_operand.vmem [shape: f32[4,128], index: 0, kind: input, shape index: {}]
  %s1 = inlined_call_operand.vmem [shape: f32[128,320], index: 1, kind: input, shape index: {}]
  %s2 = inlined_call_operand.vmem [shape: f32[1,320], index: 2, kind: input, shape index: {}]
  %s3 = inlined_call_operand.hbm [shape: f32[4,320], index: 3, kind: output, shape index: {}]
  %s4 = sld [smem:[#allocation0]]
  $region22: #{tpu_custom_call.1} parent=0
    _
  %s6 = ssub.s32 1, %s4
  %s7 = scalar_select 0, %s6, %s4
  $region1: #{tpu_custom_call.1} parent=0
    #allocation2 [shape = 'u8[6144]{0}', space=vmem, size = 0x1800, scoped, tag = 'output window, operand 0, single buffered']
    #allocation3 [shape = 's32[1]{0}', space=sflag, size = 0x4, scoped, tag = 'scoped memory for tpu_custom_call.1']
    %8 = vsyncpa [#allocation3], 0
    // Predicated region
    $region2: #{tpu_custom_call.1} parent=1 // pred_check
      _
    $region3: #{tpu_custom_call.1} parent=1 // pred_check_branch
      %10 = sbr.rel (0) target = $region5
    $region4: #{tpu_custom_call.1} parent=1 // pred_region
      _
    $region5: #{tpu_custom_call.1} parent=1 // pred_fallthru
      _
    // Predicated region
    $region6: #{tpu_custom_call.1} parent=1 // pred_check
      _
    $region7: #{tpu_custom_call.1} parent=1 // pred_check_branch
      %12 = sbr.rel (0) target = $region9
    $region8: #{tpu_custom_call.1} parent=1 // pred_region
      _
    $region9: #{tpu_custom_call.1} parent=1 // pred_fallthru
      _
    // Predicated region
    $region10: #{tpu_custom_call.1} parent=1 // pred_check
      _
    $region11: #{tpu_custom_call.1} parent=1 // pred_check_branch
      %14 = sbr.rel (0) target = $region13
    $region12: #{tpu_custom_call.1} parent=1 // pred_region
      _
    $region13: #{tpu_custom_call.1} parent=1 // pred_fallthru
      _
    %v15 = vld [vmem:[%s0] sm:$0xf]
    %v16 = vld [vmem:[%s1] sm:$0xff]
    %v17 = vld [vmem:[%s1 + $0x8] sm:$0xff]
    %v18 = vld [vmem:[%s1 + $0x10] sm:$0xff]
    %v19 = vld [vmem:[%s1 + $0x18] sm:$0xff]
    %v20 = vld [vmem:[%s1 + $0x20] sm:$0xff]
    %v21 = vld [vmem:[%s1 + $0x28] sm:$0xff]
    %v22 = vld [vmem:[%s1 + $0x30] sm:$0xff]
    %v23 = vld [vmem:[%s1 + $0x38] sm:$0xff]
    %v24 = vld [vmem:[%s1 + $0x40] sm:$0xff]
    %v25 = vld [vmem:[%s1 + $0x48] sm:$0xff]
    %v26 = vld [vmem:[%s1 + $0x50] sm:$0xff]
    %v27 = vld [vmem:[%s1 + $0x58] sm:$0xff]
    %v28 = vld [vmem:[%s1 + $0x60] sm:$0xff]
    %v29 = vld [vmem:[%s1 + $0x68] sm:$0xff]
    %v30 = vld [vmem:[%s1 + $0x70] sm:$0xff]
    %v31 = vld [vmem:[%s1 + $0x78] sm:$0xff]
    %v32 = vld [vmem:[%s1 + $0x80] sm:$0xff]
    %v33 = vld [vmem:[%s1 + $0x88] sm:$0xff]
    %v34 = vld [vmem:[%s1 + $0x90] sm:$0xff]
    %v35 = vld [vmem:[%s1 + $0x98] sm:$0xff]
    %v36 = vld [vmem:[%s1 + $0xa0] sm:$0xff]
    %v37 = vld [vmem:[%s1 + $0xa8] sm:$0xff]
    %v38 = vld [vmem:[%s1 + $0xb0] sm:$0xff]
    %v39 = vld [vmem:[%s1 + $0xb8] sm:$0xff]
    %v40 = vld [vmem:[%s1 + $0xc0] sm:$0xff]
    %v41 = vld [vmem:[%s1 + $0xc8] sm:$0xff]
    %v42 = vld [vmem:[%s1 + $0xd0] sm:$0xff]
    %v43 = vld [vmem:[%s1 + $0xd8] sm:$0xff]
    %v44 = vld [vmem:[%s1 + $0xe0] sm:$0xff]
    %v45 = vld [vmem:[%s1 + $0xe8] sm:$0xff]
    %v46 = vld [vmem:[%s1 + $0xf0] sm:$0xff]
    %v47 = vld [vmem:[%s1 + $0xf8] sm:$0xff]
    %v48 = vld [vmem:[%s1 + $0x100] sm:$0xff]
    %v49 = vld [vmem:[%s1 + $0x108] sm:$0xff]
    %v50 = vld [vmem:[%s1 + $0x110] sm:$0xff]
    %v51 = vld [vmem:[%s1 + $0x118] sm:$0xff]
    %v52 = vld [vmem:[%s1 + $0x120] sm:$0xff]
    %v53 = vld [vmem:[%s1 + $0x128] sm:$0xff]
    %v54 = vld [vmem:[%s1 + $0x130] sm:$0xff]
    %v55 = vld [vmem:[%s1 + $0x138] sm:$0xff]
    %v56 = vld [vmem:[%s1 + $0x140] sm:$0xff]
    %v57 = vld [vmem:[%s1 + $0x148] sm:$0xff]
    %v58 = vld [vmem:[%s1 + $0x150] sm:$0xff]
    %v59 = vld [vmem:[%s1 + $0x158] sm:$0xff]
    %v60 = vld [vmem:[%s1 + $0x160] sm:$0xff]
    %v61 = vld [vmem:[%s1 + $0x168] sm:$0xff]
    %v62 = vld [vmem:[%s1 + $0x170] sm:$0xff]
    %v63 = vld [vmem:[%s1 + $0x178] sm:$0xff]
    %v64 = vld [vmem:[%s2] sm:$0x7]
    %v66 = vperm.slane %v64, 0
    %v67 = vperm.slane %v64, 1
    %v68 = vperm.slane %v64, 2
    %72 = vmatpush.msra.mxu0 %v61
    %73 = vmatpush.msra.mxu0 %v58
    %74 = vmatpush.msra.mxu0 %v55
    %75 = vmatpush.msra.mxu0 %v52
    %76 = vmatpush.msra.mxu0 %v49
    %77 = vmatpush.msra.mxu0 %v46
    %78 = vmatpush.msra.mxu0 %v43
    %79 = vmatpush.msra.mxu0 %v40
    %80 = vmatpush.msra.mxu0 %v37
    %81 = vmatpush.msra.mxu0 %v34
    %82 = vmatpush.msra.mxu0 %v31
    %83 = vmatpush.msra.mxu0 %v28
    %84 = vmatpush.msra.mxu0 %v25
    %85 = vmatpush.msra.mxu0 %v22
    %86 = vmatpush.msra.mxu0 %v19
    %87 = vmatpush.msra.mxu0 %v16
    %88 = vmatmul.f32.gmra.mxu0 %v15
    %v89 = vpop.f32.mrf.mxu0
    %v90 = vadd.f32 %v66, %v89
    %91 = vdwg.mxu0
    %92 = vmatpush.msra.mxu0 %v62
    %93 = vmatpush.msra.mxu0 %v59
    %94 = vmatpush.msra.mxu0 %v56
    %95 = vmatpush.msra.mxu0 %v53
    %96 = vmatpush.msra.mxu0 %v50
    %97 = vmatpush.msra.mxu0 %v47
    %98 = vmatpush.msra.mxu0 %v44
    %99 = vmatpush.msra.mxu0 %v41
    %100 = vmatpush.msra.mxu0 %v38
    %101 = vmatpush.msra.mxu0 %v35
    %102 = vmatpush.msra.mxu0 %v32
    %103 = vmatpush.msra.mxu0 %v29
    %104 = vmatpush.msra.mxu0 %v26
    %105 = vmatpush.msra.mxu0 %v23
    %106 = vmatpush.msra.mxu0 %v20
    %107 = vmatpush.msra.mxu0 %v17
    %108 = vmatmul.f32.gmra.mxu0 %v15
    %v109 = vpop.f32.mrf.mxu0
    %v110 = vadd.f32 %v67, %v109
    %111 = vdwg.mxu0
    %112 = vmatpush.msra.mxu0 %v63
    %113 = vmatpush.msra.mxu0 %v60
    %114 = vmatpush.msra.mxu0 %v57
    %115 = vmatpush.msra.mxu0 %v54
    %116 = vmatpush.msra.mxu0 %v51
    %117 = vmatpush.msra.mxu0 %v48
    %118 = vmatpush.msra.mxu0 %v45
    %119 = vmatpush.msra.mxu0 %v42
    %120 = vmatpush.msra.mxu0 %v39
    %121 = vmatpush.msra.mxu0 %v36
    %122 = vmatpush.msra.mxu0 %v33
    %123 = vmatpush.msra.mxu0 %v30
    %124 = vmatpush.msra.mxu0 %v27
    %125 = vmatpush.msra.mxu0 %v24
    %126 = vmatpush.msra.mxu0 %v21
    %127 = vmatpush.msra.mxu0 %v18
    %128 = vmatmul.f32.gmra.mxu0 %v15
    %v129 = vpop.f32.mrf.mxu0
    %v130 = vadd.f32 %v68, %v129
    %131 = vdwg.mxu0
    %v134 = vrot.slane %v110, 4
    %vm135 = vcmask 1043456
    %v136 = vsel %vm135, %v90, %v134
    %138 = vst [vmem:[#allocation2] sm:$0xff] %v136
    %vm139 = vcmask 519168
    %140 = vst.msk [vmem:[#allocation2 + $0x8] sm:$0xf] %vm139, %v130
    // Predicated region
    $region14: #{tpu_custom_call.1} parent=1 // pred_check
      _
    $region15: #{tpu_custom_call.1} parent=1 // pred_check_branch
      %142 = sbr.rel (0) target = $region17
    $region16: #{tpu_custom_call.1} parent=1 // pred_region
      %144 = vsyncadd [#allocation3], 0
      %s146 = sshll.u32 [#allocation2], 4
      %s147 = int_to_ptr.vmem [resolvable:$true] %s146
      %s148 = sshll.u32 %s3, 4
      %s149 = int_to_ptr.hbm [resolvable:$true] %s148
      %151 = dma.vmem_to_hbm [thread:$0]  %s147, 192, %s149, [#allocation3]
    $region17: #{tpu_custom_call.1} parent=1 // pred_fallthru
      _
    // Predicated region
    $region18: #{tpu_custom_call.1} parent=1 // pred_check
      _
    $region19: #{tpu_custom_call.1} parent=1 // pred_check_branch
      %153 = sbr.rel (0) target = $region21
    $region20: #{tpu_custom_call.1} parent=1 // pred_region
      %155 = dma.done [#allocation3], 192
    $region21: #{tpu_custom_call.1} parent=1 // pred_fallthru
      _
    %156 = vsyncpa [#allocation3], 1

</llo_original>
